<compile_context>
chip_gen: v7x
topology: tpu7x:2x2x1
jax: 0.10.0
libtpu: 0.0.40
codegen_flags: <defaults>
</compile_context>

<pallas_src>
import math

import jax
import jax.numpy as jnp
from jax import lax
from jax.experimental import pallas as pl
from jax.experimental.pallas import tpu as pltpu  # noqa: F401 (kept for parity)

N = 32          # matrix size (module __init__ argument)
SQUARINGS = 5   # exp(A) = exp(A / 2^S)^(2^S)
TAYLOR_DEG = 8  # degree-8 Taylor polynomial of the scaled matrix


def orthogonal_matrix_kernel(mat_ref, out_ref):
    n = mat_ref.shape[0]
    m = mat_ref[...].astype(jnp.float32)

    # --- SkewSymmetricMatrix.forward: upper = triu(m); ss = upper - upper.T ---
    row = lax.broadcasted_iota(jnp.int32, (n, n), 0)
    col = lax.broadcasted_iota(jnp.int32, (n, n), 1)
    upper = jnp.where(col >= row, m, 0.0)
    ss = upper - upper.T                        # skew-symmetric, zero diagonal

    eye = jnp.where(row == col, 1.0, 0.0).astype(jnp.float32)

    # --- scaling: B = ss / 2^S ---
    b = ss * jnp.float32(1.0 / (2.0 ** SQUARINGS))

    # --- powers of B: minimum-depth chain for a degree-8 polynomial ---
    b2 = jnp.dot(b, b, preferred_element_type=jnp.float32)    # serial depth 1
    b3 = jnp.dot(b, b2, preferred_element_type=jnp.float32)   # depth 2 (indep. of b4)
    b4 = jnp.dot(b2, b2, preferred_element_type=jnp.float32)  # depth 2 (pipelines w/ b3)

    # --- Paterson-Stockmeyer, degree 8:
    #   exp(B) ~= Q0 + B^4 @ Q1
    #   Q0 = I + B + B^2/2! + B^3/3!
    #   Q1 = I/4! + B/5! + B^2/6! + B^3/7! + B^4/8!   (B^4 term is elementwise)
    # Coefficients are compile-time Python constants.
    inv = [1.0 / math.factorial(k) for k in range(TAYLOR_DEG + 1)]
    q0 = eye * inv[0] + b * inv[1] + b2 * inv[2] + b3 * inv[3]
    q1 = eye * inv[4] + b * inv[5] + b2 * inv[6] + b3 * inv[7] + b4 * inv[8]
    r = q0 + jnp.dot(b4, q1, preferred_element_type=jnp.float32)   # serial depth 3

    # --- unrolled squarings: exp(ss) = exp(B)^(2^S) ---   serial depths 4..8
    for _ in range(SQUARINGS):
        r = jnp.dot(r, r, preferred_element_type=jnp.float32)

    out_ref[...] = r.astype(out_ref.dtype)


def orthogonal_matrix(mat):
    n = mat.shape[0]
    return pl.pallas_call(
        orthogonal_matrix_kernel,
        out_shape=jax.ShapeDtypeStruct((n, n), jnp.float32),
        grid=(),
        in_specs=[pl.BlockSpec((n, n), lambda: (0, 0))],
        out_specs=pl.BlockSpec((n, n), lambda: (0, 0)),
    )(mat)


if __name__ == "__main__":
    key = jax.random.PRNGKey(0)
    # nn.Parameter(torch.randn(n, n)) -> deterministic standard-normal init
    mat = jax.random.normal(key, (N, N), dtype=jnp.float32)

    out = orthogonal_matrix(mat)
    out = jax.block_until_ready(out)

    # Correctness checks (reference computed at highest matmul precision so the
    # check itself does not add bf16 noise).  Kept as the accuracy guard for the
    # reduced SQUARINGS / Taylor degree.
    with jax.default_matmul_precision("highest"):
        upper = jnp.triu(mat)
        ss = upper - upper.T
        ref = jax.scipy.linalg.expm(ss)
        ref = jax.block_until_ready(ref)
        err = float(jnp.max(jnp.abs(out - ref)))
        ortho = float(jnp.max(jnp.abs(out @ out.T - jnp.eye(N, dtype=jnp.float32))))

    assert err < 2e-3, f"mismatch vs expm reference: {err}"
    assert ortho < 1e-3, f"orthogonality error too large: {ortho}"

    print("KERNEL_OK")
</pallas_src>

<mosaic_0001>
module attributes {stable_mosaic.version = 11 : i64} {
  func.func @orthogonal_matrix_kernel(%arg0: memref<32x32xf32, #tpu.memory_space<vmem>>, %arg1: memref<32x32xf32, #tpu.memory_space<vmem>>) attributes {dimension_semantics = [], scalar_prefetch = 0 : i64, scratch_operands = 0 : i64, tpu.core_type = #tpu.core_type<tc>} {
    %c0 = arith.constant 0 : index
    %c0_0 = arith.constant 0 : index
    %0 = vector.load %arg0[%c0, %c0_0] : memref<32x32xf32, #tpu.memory_space<vmem>>, vector<32x32xf32>
    %1 = tpu.iota {dimensions = array<i32: 0>} : vector<32x32xi32>
    %2 = tpu.iota {dimensions = array<i32: 1>} : vector<32x32xi32>
    %3 = arith.cmpi sge, %2, %1 : vector<32x32xi32>
    %cst = arith.constant 0.000000e+00 : f32
    %4 = vector.broadcast %cst : f32 to vector<32x32xf32>
    %5 = arith.select %3, %0, %4 : vector<32x32xi1>, vector<32x32xf32>
    %6 = tpu.transpose %5, [1, 0] : vector<32x32xf32> -> vector<32x32xf32>
    %7 = arith.subf %5, %6 : vector<32x32xf32>
    %8 = arith.cmpi eq, %1, %2 : vector<32x32xi32>
    %cst_1 = arith.constant 1.000000e+00 : f32
    %cst_2 = arith.constant 0.000000e+00 : f32
    %9 = vector.broadcast %cst_1 : f32 to vector<32x32xf32>
    %10 = vector.broadcast %cst_2 : f32 to vector<32x32xf32>
    %11 = arith.select %8, %9, %10 : vector<32x32xi1>, vector<32x32xf32>
    %cst_3 = arith.constant 3.125000e-02 : f32
    %12 = vector.broadcast %cst_3 : f32 to vector<32x32xf32>
    %13 = arith.mulf %7, %12 : vector<32x32xf32>
    %cst_4 = arith.constant dense<0.000000e+00> : vector<32x32xf32>
    %14 = tpu.matmul %13, %13, %cst_4 {dimension_numbers = #tpu.dot_dimension_numbers<[1], [0], [0], [1], [0, 0, 1, 1], [], []>} : vector<32x32xf32>, vector<32x32xf32>, vector<32x32xf32> -> vector<32x32xf32>
    %cst_5 = arith.constant dense<0.000000e+00> : vector<32x32xf32>
    %15 = tpu.matmul %13, %14, %cst_5 {dimension_numbers = #tpu.dot_dimension_numbers<[1], [0], [0], [1], [0, 0, 1, 1], [], []>} : vector<32x32xf32>, vector<32x32xf32>, vector<32x32xf32> -> vector<32x32xf32>
    %cst_6 = arith.constant dense<0.000000e+00> : vector<32x32xf32>
    %16 = tpu.matmul %14, %14, %cst_6 {dimension_numbers = #tpu.dot_dimension_numbers<[1], [0], [0], [1], [0, 0, 1, 1], [], []>} : vector<32x32xf32>, vector<32x32xf32>, vector<32x32xf32> -> vector<32x32xf32>
    %cst_7 = arith.constant 1.000000e+00 : f32
    %17 = vector.broadcast %cst_7 : f32 to vector<32x32xf32>
    %18 = arith.mulf %11, %17 : vector<32x32xf32>
    %cst_8 = arith.constant 1.000000e+00 : f32
    %19 = vector.broadcast %cst_8 : f32 to vector<32x32xf32>
    %20 = arith.mulf %13, %19 : vector<32x32xf32>
    %21 = arith.addf %18, %20 : vector<32x32xf32>
    %cst_9 = arith.constant 5.000000e-01 : f32
    %22 = vector.broadcast %cst_9 : f32 to vector<32x32xf32>
    %23 = arith.mulf %14, %22 : vector<32x32xf32>
    %24 = arith.addf %21, %23 : vector<32x32xf32>
    %cst_10 = arith.constant 0.166666672 : f32
    %25 = vector.broadcast %cst_10 : f32 to vector<32x32xf32>
    %26 = arith.mulf %15, %25 : vector<32x32xf32>
    %27 = arith.addf %24, %26 : vector<32x32xf32>
    %cst_11 = arith.constant 0.0416666679 : f32
    %28 = vector.broadcast %cst_11 : f32 to vector<32x32xf32>
    %29 = arith.mulf %11, %28 : vector<32x32xf32>
    %cst_12 = arith.constant 0.00833333377 : f32
    %30 = vector.broadcast %cst_12 : f32 to vector<32x32xf32>
    %31 = arith.mulf %13, %30 : vector<32x32xf32>
    %32 = arith.addf %29, %31 : vector<32x32xf32>
    %cst_13 = arith.constant 0.00138888892 : f32
    %33 = vector.broadcast %cst_13 : f32 to vector<32x32xf32>
    %34 = arith.mulf %14, %33 : vector<32x32xf32>
    %35 = arith.addf %32, %34 : vector<32x32xf32>
    %cst_14 = arith.constant 1.98412701E-4 : f32
    %36 = vector.broadcast %cst_14 : f32 to vector<32x32xf32>
    %37 = arith.mulf %15, %36 : vector<32x32xf32>
    %38 = arith.addf %35, %37 : vector<32x32xf32>
    %cst_15 = arith.constant 2.48015876E-5 : f32
    %39 = vector.broadcast %cst_15 : f32 to vector<32x32xf32>
    %40 = arith.mulf %16, %39 : vector<32x32xf32>
    %41 = arith.addf %38, %40 : vector<32x32xf32>
    %cst_16 = arith.constant dense<0.000000e+00> : vector<32x32xf32>
    %42 = tpu.matmul %16, %41, %cst_16 {dimension_numbers = #tpu.dot_dimension_numbers<[1], [0], [0], [1], [0, 0, 1, 1], [], []>} : vector<32x32xf32>, vector<32x32xf32>, vector<32x32xf32> -> vector<32x32xf32>
    %43 = arith.addf %27, %42 : vector<32x32xf32>
    %cst_17 = arith.constant dense<0.000000e+00> : vector<32x32xf32>
    %44 = tpu.matmul %43, %43, %cst_17 {dimension_numbers = #tpu.dot_dimension_numbers<[1], [0], [0], [1], [0, 0, 1, 1], [], []>} : vector<32x32xf32>, vector<32x32xf32>, vector<32x32xf32> -> vector<32x32xf32>
    %cst_18 = arith.constant dense<0.000000e+00> : vector<32x32xf32>
    %45 = tpu.matmul %44, %44, %cst_18 {dimension_numbers = #tpu.dot_dimension_numbers<[1], [0], [0], [1], [0, 0, 1, 1], [], []>} : vector<32x32xf32>, vector<32x32xf32>, vector<32x32xf32> -> vector<32x32xf32>
    %cst_19 = arith.constant dense<0.000000e+00> : vector<32x32xf32>
    %46 = tpu.matmul %45, %45, %cst_19 {dimension_numbers = #tpu.dot_dimension_numbers<[1], [0], [0], [1], [0, 0, 1, 1], [], []>} : vector<32x32xf32>, vector<32x32xf32>, vector<32x32xf32> -> vector<32x32xf32>
    %cst_20 = arith.constant dense<0.000000e+00> : vector<32x32xf32>
    %47 = tpu.matmul %46, %46, %cst_20 {dimension_numbers = #tpu.dot_dimension_numbers<[1], [0], [0], [1], [0, 0, 1, 1], [], []>} : vector<32x32xf32>, vector<32x32xf32>, vector<32x32xf32> -> vector<32x32xf32>
    %cst_21 = arith.constant dense<0.000000e+00> : vector<32x32xf32>
    %48 = tpu.matmul %47, %47, %cst_21 {dimension_numbers = #tpu.dot_dimension_numbers<[1], [0], [0], [1], [0, 0, 1, 1], [], []>} : vector<32x32xf32>, vector<32x32xf32>, vector<32x32xf32> -> vector<32x32xf32>
    %c0_22 = arith.constant 0 : index
    %c0_23 = arith.constant 0 : index
    %49 = vector.load %arg1[%c0_22, %c0_23] : memref<32x32xf32, #tpu.memory_space<vmem>>, vector<32x32xf32>
    tpu.vector_store %arg1[%c0_22, %c0_23], %48 {strides = array<i32>} : memref<32x32xf32, #tpu.memory_space<vmem>>, vector<32x32xf32>,
    return
  }
}

</mosaic_0001>

<llo_original>
// kernel: tpu_custom_call.1
$region0: #{tpu_custom_call.1}
  #allocation0 [shape = 'u32[]', space=smem, size = 0x4, offset = 0x4, fixed_abs, tag = 'smem constant byte address 0x4 - core index']
  #allocation1 [shape = 'u32[144,128]{1,0:T(1,128)}', space=vmem, size = 0x12000, scoped, tag = 'internal scratch']
  %s0 = inlined_call_operand.hbm [shape: f32[32,32], index: 0, kind: input, shape index: {}]
  %s1 = inlined_call_operand.hbm [shape: f32[32,32], index: 1, kind: output, shape index: {}]
  %s2 = sld [smem:[#allocation0]]
  $region18: #{tpu_custom_call.1} parent=0
    _
  %s4 = ssub.s32 1, %s2
  %s5 = scalar_select 0, %s4, %s2
  $region1: #{tpu_custom_call.1} parent=0
    #allocation2 [shape = 'u8[16384]{0}', space=vmem, size = 0x4000, scoped, tag = 'input window, operand 0, single buffered']
    #allocation3 [shape = 's32[1]{0}', space=sflag, size = 0x4, scoped, tag = 'scoped memory for tpu_custom_call.1']
    #allocation4 [shape = 's32[1]{0}', space=sflag, size = 0x4, scoped, tag = 'scoped memory for tpu_custom_call.1']
    #allocation5 [shape = 'u8[16384]{0}', space=vmem, size = 0x4000, scoped, tag = 'output window, operand 0, single buffered']
    %6 = vsyncpa [#allocation3], 0
    %7 = vsyncpa [#allocation4], 0
    // Predicated region
    $region2: #{tpu_custom_call.1} parent=1 // pred_check
      _
    $region3: #{tpu_custom_call.1} parent=1 // pred_check_branch
      %9 = sbr.rel (0) target = $region5
    $region4: #{tpu_custom_call.1} parent=1 // pred_region
      %s11 = ssub.s32 512, 512
      %12 = vsyncadd [#allocation3], %s11
      %s13 = sshll.u32 [#allocation2], 4
      %s14 = int_to_ptr.vmem [resolvable:$true] %s13
      %19 = dma.hbm_to_vmem [thread:$0]  %s0, 512, %s14, [#allocation3], 128, 128, 8
    $region5: #{tpu_custom_call.1} parent=1 // pred_fallthru
      _
    // Predicated region
    $region6: #{tpu_custom_call.1} parent=1 // pred_check
      _
    $region7: #{tpu_custom_call.1} parent=1 // pred_check_branch
      %21 = sbr.rel (0) target = $region9
    $region8: #{tpu_custom_call.1} parent=1 // pred_region
      %22 = dma.done [#allocation3], 512
    $region9: #{tpu_custom_call.1} parent=1 // pred_fallthru
      _
    %v23 = vld [vmem:[#allocation2] sm:$0xff]
    %v24 = vld [vmem:[#allocation2 + $0x8] sm:$0xff]
    %v25 = vld [vmem:[#allocation2 + $0x10] sm:$0xff]
    %v26 = vld [vmem:[#allocation2 + $0x18] sm:$0xff]
    %v27 = vlaneseq
    %v28 = vshrl.u32 %v27, 7
    %v29 = vadd.s32 %v28, 8
    %v30 = vadd.s32 %v28, 16
    %v31 = vadd.s32 %v28, 24
    %v32 = vlaneseq
    %v33 = vand.u32 %v32, 127
    %vm34 = vcmp.ge.s32.totalorder %v33, %v28
    %vm35 = vcmp.ge.s32.totalorder %v33, %v29
    %vm36 = vcmp.ge.s32.totalorder %v33, %v30
    %vm37 = vcmp.ge.s32.totalorder %v33, %v31
    %v38 = vsel %vm34, %v23, 0.0
    %v39 = vsel %vm35, %v24, 0.0
    %v40 = vsel %vm36, %v25, 0.0
    %v41 = vsel %vm37, %v26, 0.0
    %42 = vxpose.xlu0.b32.start [1/16] %v38, 128
    %43 = vxpose.xlu0.b32.cont [2/16] %v39, 128
    %44 = vxpose.xlu0.b32.cont [3/16] %v40, 128
    %45 = vxpose.xlu0.b32.cont [4/16] %v41, 128
    %46 = vxpose.xlu0.b32.cont [5/16] 0.0, 128
    %47 = vxpose.xlu0.b32.cont [6/16] 0.0, 128
    %48 = vxpose.xlu0.b32.cont [7/16] 0.0, 128
    %49 = vxpose.xlu0.b32.cont [8/16] 0.0, 128
    %50 = vxpose.xlu0.b32.cont [9/16] 0.0, 128
    %51 = vxpose.xlu0.b32.cont [10/16] 0.0, 128
    %52 = vxpose.xlu0.b32.cont [11/16] 0.0, 128
    %53 = vxpose.xlu0.b32.cont [12/16] 0.0, 128
    %54 = vxpose.xlu0.b32.cont [13/16] 0.0, 128
    %55 = vxpose.xlu0.b32.cont [14/16] 0.0, 128
    %56 = vxpose.xlu0.b32.cont [15/16] 0.0, 128
    %57 = vxpose.xlu0.b32.end [16/16] 0.0, 128
    %v58 = vpop.trf.xlu0
    %v59 = vpop.trf.xlu0
    %v60 = vpop.trf.xlu0
    %v61 = vpop.trf.xlu0
    %v62 = vpop.trf.xlu0
    %v63 = vpop.trf.xlu0
    %v64 = vpop.trf.xlu0
    %v65 = vpop.trf.xlu0
    %v66 = vpop.trf.xlu0
    %v67 = vpop.trf.xlu0
    %v68 = vpop.trf.xlu0
    %v69 = vpop.trf.xlu0
    %v70 = vpop.trf.xlu0
    %v71 = vpop.trf.xlu0
    %v72 = vpop.trf.xlu0
    %v73 = vpop.trf.xlu0
    %v74 = vsub.f32 %v38, %v58
    %v75 = vsub.f32 %v39, %v59
    %v76 = vsub.f32 %v40, %v60
    %v77 = vsub.f32 %v41, %v61
    %vm78 = vcmp.eq.s32.totalorder %v28, %v33
    %vm79 = vcmp.eq.s32.totalorder %v29, %v33
    %vm80 = vcmp.eq.s32.totalorder %v30, %v33
    %vm81 = vcmp.eq.s32.totalorder %v31, %v33
    %v82 = vsel %vm78, 1.0, 0.0
    %v83 = vsel %vm79, 1.0, 0.0
    %v84 = vsel %vm80, 1.0, 0.0
    %v85 = vsel %vm81, 1.0, 0.0
    %v86 = vmul.f32 %v74, 0.03125
    %v87 = vmul.f32 %v75, 0.03125
    %v88 = vmul.f32 %v76, 0.03125
    %v89 = vmul.f32 %v77, 0.03125
    %vm90 = vcmask 261120
    %v92 = vsel %vm90, %v86, 0
    %v95 = vsel %vm90, %v87, 0
    %v98 = vsel %vm90, %v88, 0
    %v101 = vsel %vm90, %v89, 0
    %103 = vmatprep.subr.mxu0 0.0
    %104 = vmatpush1.msra.mxu0 %v86
    %105 = vmatprep.subr.mxu0 0.0
    %106 = vmatpush1.msra.mxu0 %v87
    %107 = vmatprep.subr.mxu0 0.0
    %108 = vmatpush1.msra.mxu0 %v88
    %109 = vmatprep.subr.mxu0 0.0
    %110 = vmatpush1.msra.mxu0 %v89
    %111 = vmatprep.subr.mxu0 0.0
    %112 = vmatpush1.msra.mxu0 0.0
    %113 = vmatprep.subr.mxu0 0.0
    %114 = vmatpush1.msra.mxu0 0.0
    %115 = vmatprep.subr.mxu0 0.0
    %116 = vmatpush1.msra.mxu0 0.0
    %117 = vmatprep.subr.mxu0 0.0
    %118 = vmatpush1.msra.mxu0 0.0
    %119 = vmatprep.subr.mxu0 0.0
    %120 = vmatpush1.msra.mxu0 0.0
    %121 = vmatprep.subr.mxu0 0.0
    %122 = vmatpush1.msra.mxu0 0.0
    %123 = vmatprep.subr.mxu0 0.0
    %124 = vmatpush1.msra.mxu0 0.0
    %125 = vmatprep.subr.mxu0 0.0
    %126 = vmatpush1.msra.mxu0 0.0
    %127 = vmatprep.subr.mxu0 0.0
    %128 = vmatpush1.msra.mxu0 0.0
    %129 = vmatprep.subr.mxu0 0.0
    %130 = vmatpush1.msra.mxu0 0.0
    %131 = vmatprep.subr.mxu0 0.0
    %132 = vmatpush1.msra.mxu0 0.0
    %133 = vmatprep.subr.mxu0 0.0
    %134 = vmatpush1.msra.mxu0 0.0
    %135 = vmatprep.subr.mxu0 0.0
    %136 = vmatpush1.msra.mxu0 0.0
    %137 = vmatprep.subr.mxu0 0.0
    %138 = vmatpush1.msra.mxu0 0.0
    %139 = vmatprep.subr.mxu0 0.0
    %140 = vmatpush1.msra.mxu0 0.0
    %141 = vmatprep.subr.mxu0 0.0
    %142 = vmatpush1.msra.mxu0 0.0
    %143 = vmatprep.subr.mxu0 0.0
    %144 = vmatpush1.msra.mxu0 0.0
    %145 = vmatprep.subr.mxu0 0.0
    %146 = vmatpush1.msra.mxu0 0.0
    %147 = vmatprep.subr.mxu0 0.0
    %148 = vmatpush1.msra.mxu0 0.0
    %149 = vmatprep.subr.mxu0 0.0
    %150 = vmatpush1.msra.mxu0 0.0
    %151 = vmatprep.subr.mxu0 0.0
    %152 = vmatpush1.msra.mxu0 0.0
    %153 = vmatprep.subr.mxu0 0.0
    %154 = vmatpush1.msra.mxu0 0.0
    %155 = vmatprep.subr.mxu0 0.0
    %156 = vmatpush1.msra.mxu0 0.0
    %157 = vmatprep.subr.mxu0 0.0
    %158 = vmatpush1.msra.mxu0 0.0
    %159 = vmatprep.subr.mxu0 0.0
    %160 = vmatpush1.msra.mxu0 0.0
    %161 = vmatprep.subr.mxu0 0.0
    %162 = vmatpush1.msra.mxu0 0.0
    %163 = vmatprep.subr.mxu0 0.0
    %164 = vmatpush1.msra.mxu0 0.0
    %165 = vmatprep.subr.mxu0 0.0
    %166 = vmatpush1.msra.mxu0 0.0
    %167 = vmatprep.mubr.f32.mxu0 0.0
    %168 = vmatmul.mubr.f32.gmra.mrb[0].mxu0 %v92
    %v169 = vpop.f32.mrb[0].mxu0
    %v170 = vadd.f32 0.0, %v169
    %v171 = vpop.f32.mrb[0].mxu0
    %172 = vmatprep.mubr.f32.mxu0 0.0
    %173 = vmatmul.mubr.f32.gmra.mrb[0].mxu0 %v95
    %v174 = vpop.f32.mrb[0].mxu0
    %v175 = vadd.f32 0.0, %v174
    %v176 = vpop.f32.mrb[0].mxu0
    %177 = vmatprep.mubr.f32.mxu0 0.0
    %178 = vmatmul.mubr.f32.gmra.mrb[0].mxu0 %v98
    %v179 = vpop.f32.mrb[0].mxu0
    %v180 = vadd.f32 0.0, %v179
    %v181 = vpop.f32.mrb[0].mxu0
    %182 = vmatprep.mubr.f32.mxu0 0.0
    %183 = vmatmul.mubr.f32.gmra.mrb[0].mxu0 %v101
    %v184 = vpop.f32.mrb[0].mxu0
    %v185 = vadd.f32 0.0, %v184
    %v186 = vpop.f32.mrb[0].mxu0
    %187 = vdwg.mxu0
    %188 = vmatprep.subr.mxu0 0.0
    %189 = vmatpush1.msra.mxu0 %v170
    %190 = vmatprep.subr.mxu0 0.0
    %191 = vmatpush1.msra.mxu0 %v175
    %192 = vmatprep.subr.mxu0 0.0
    %193 = vmatpush1.msra.mxu0 %v180
    %194 = vmatprep.subr.mxu0 0.0
    %195 = vmatpush1.msra.mxu0 %v185
    %196 = vmatprep.subr.mxu0 0.0
    %197 = vmatpush1.msra.mxu0 0.0
    %198 = vmatprep.subr.mxu0 0.0
    %199 = vmatpush1.msra.mxu0 0.0
    %200 = vmatprep.subr.mxu0 0.0
    %201 = vmatpush1.msra.mxu0 0.0
    %202 = vmatprep.subr.mxu0 0.0
    %203 = vmatpush1.msra.mxu0 0.0
    %204 = vmatprep.subr.mxu0 0.0
    %205 = vmatpush1.msra.mxu0 0.0
    %206 = vmatprep.subr.mxu0 0.0
    %207 = vmatpush1.msra.mxu0 0.0
    %208 = vmatprep.subr.mxu0 0.0
    %209 = vmatpush1.msra.mxu0 0.0
    %210 = vmatprep.subr.mxu0 0.0
    %211 = vmatpush1.msra.mxu0 0.0
    %212 = vmatprep.subr.mxu0 0.0
    %213 = vmatpush1.msra.mxu0 0.0
    %214 = vmatprep.subr.mxu0 0.0
    %215 = vmatpush1.msra.mxu0 0.0
    %216 = vmatprep.subr.mxu0 0.0
    %217 = vmatpush1.msra.mxu0 0.0
    %218 = vmatprep.subr.mxu0 0.0
    %219 = vmatpush1.msra.mxu0 0.0
    %220 = vmatprep.subr.mxu0 0.0
    %221 = vmatpush1.msra.mxu0 0.0
    %222 = vmatprep.subr.mxu0 0.0
    %223 = vmatpush1.msra.mxu0 0.0
    %224 = vmatprep.subr.mxu0 0.0
    %225 = vmatpush1.msra.mxu0 0.0
    %226 = vmatprep.subr.mxu0 0.0
    %227 = vmatpush1.msra.mxu0 0.0
    %228 = vmatprep.subr.mxu0 0.0
    %229 = vmatpush1.msra.mxu0 0.0
    %230 = vmatprep.subr.mxu0 0.0
    %231 = vmatpush1.msra.mxu0 0.0
    %232 = vmatprep.subr.mxu0 0.0
    %233 = vmatpush1.msra.mxu0 0.0
    %234 = vmatprep.subr.mxu0 0.0
    %235 = vmatpush1.msra.mxu0 0.0
    %236 = vmatprep.subr.mxu0 0.0
    %237 = vmatpush1.msra.mxu0 0.0
    %238 = vmatprep.subr.mxu0 0.0
    %239 = vmatpush1.msra.mxu0 0.0
    %240 = vmatprep.subr.mxu0 0.0
    %241 = vmatpush1.msra.mxu0 0.0
    %242 = vmatprep.subr.mxu0 0.0
    %243 = vmatpush1.msra.mxu0 0.0
    %244 = vmatprep.subr.mxu0 0.0
    %245 = vmatpush1.msra.mxu0 0.0
    %246 = vmatprep.subr.mxu0 0.0
    %247 = vmatpush1.msra.mxu0 0.0
    %248 = vmatprep.subr.mxu0 0.0
    %249 = vmatpush1.msra.mxu0 0.0
    %250 = vmatprep.subr.mxu0 0.0
    %251 = vmatpush1.msra.mxu0 0.0
    %252 = vmatprep.mubr.f32.mxu0 0.0
    %253 = vmatmul.mubr.f32.gmra.mrb[0].mxu0 %v92
    %v254 = vpop.f32.mrb[0].mxu0
    %v255 = vadd.f32 0.0, %v254
    %v256 = vpop.f32.mrb[0].mxu0
    %257 = vmatprep.mubr.f32.mxu0 0.0
    %258 = vmatmul.mubr.f32.gmra.mrb[0].mxu0 %v95
    %v259 = vpop.f32.mrb[0].mxu0
    %v260 = vadd.f32 0.0, %v259
    %v261 = vpop.f32.mrb[0].mxu0
    %262 = vmatprep.mubr.f32.mxu0 0.0
    %263 = vmatmul.mubr.f32.gmra.mrb[0].mxu0 %v98
    %v264 = vpop.f32.mrb[0].mxu0
    %v265 = vadd.f32 0.0, %v264
    %v266 = vpop.f32.mrb[0].mxu0
    %267 = vmatprep.mubr.f32.mxu0 0.0
    %268 = vmatmul.mubr.f32.gmra.mrb[0].mxu0 %v101
    %v269 = vpop.f32.mrb[0].mxu0
    %v270 = vadd.f32 0.0, %v269
    %v271 = vpop.f32.mrb[0].mxu0
    %272 = vdwg.mxu0
    %v274 = vsel %vm90, %v170, 0
    %v277 = vsel %vm90, %v175, 0
    %v280 = vsel %vm90, %v180, 0
    %v283 = vsel %vm90, %v185, 0
    %285 = vmatprep.subr.mxu0 0.0
    %286 = vmatpush1.msra.mxu0 %v170
    %287 = vmatprep.subr.mxu0 0.0
    %288 = vmatpush1.msra.mxu0 %v175
    %289 = vmatprep.subr.mxu0 0.0
    %290 = vmatpush1.msra.mxu0 %v180
    %291 = vmatprep.subr.mxu0 0.0
    %292 = vmatpush1.msra.mxu0 %v185
    %293 = vmatprep.subr.mxu0 0.0
    %294 = vmatpush1.msra.mxu0 0.0
    %295 = vmatprep.subr.mxu0 0.0
    %296 = vmatpush1.msra.mxu0 0.0
    %297 = vmatprep.subr.mxu0 0.0
    %298 = vmatpush1.msra.mxu0 0.0
    %299 = vmatprep.subr.mxu0 0.0
    %300 = vmatpush1.msra.mxu0 0.0
    %301 = vmatprep.subr.mxu0 0.0
    %302 = vmatpush1.msra.mxu0 0.0
    %303 = vmatprep.subr.mxu0 0.0
    %304 = vmatpush1.msra.mxu0 0.0
    %305 = vmatprep.subr.mxu0 0.0
    %306 = vmatpush1.msra.mxu0 0.0
    %307 = vmatprep.subr.mxu0 0.0
    %308 = vmatpush1.msra.mxu0 0.0
    %309 = vmatprep.subr.mxu0 0.0
    %310 = vmatpush1.msra.mxu0 0.0
    %311 = vmatprep.subr.mxu0 0.0
    %312 = vmatpush1.msra.mxu0 0.0
    %313 = vmatprep.subr.mxu0 0.0
    %314 = vmatpush1.msra.mxu0 0.0
    %315 = vmatprep.subr.mxu0 0.0
    %316 = vmatpush1.msra.mxu0 0.0
    %317 = vmatprep.subr.mxu0 0.0
    %318 = vmatpush1.msra.mxu0 0.0
    %319 = vmatprep.subr.mxu0 0.0
    %320 = vmatpush1.msra.mxu0 0.0
    %321 = vmatprep.subr.mxu0 0.0
    %322 = vmatpush1.msra.mxu0 0.0
    %323 = vmatprep.subr.mxu0 0.0
    %324 = vmatpush1.msra.mxu0 0.0
    %325 = vmatprep.subr.mxu0 0.0
    %326 = vmatpush1.msra.mxu0 0.0
    %327 = vmatprep.subr.mxu0 0.0
    %328 = vmatpush1.msra.mxu0 0.0
    %329 = vmatprep.subr.mxu0 0.0
    %330 = vmatpush1.msra.mxu0 0.0
    %331 = vmatprep.subr.mxu0 0.0
    %332 = vmatpush1.msra.mxu0 0.0
    %333 = vmatprep.subr.mxu0 0.0
    %334 = vmatpush1.msra.mxu0 0.0
    %335 = vmatprep.subr.mxu0 0.0
    %336 = vmatpush1.msra.mxu0 0.0
    %337 = vmatprep.subr.mxu0 0.0
    %338 = vmatpush1.msra.mxu0 0.0
    %339 = vmatprep.subr.mxu0 0.0
    %340 = vmatpush1.msra.mxu0 0.0
    %341 = vmatprep.subr.mxu0 0.0
    %342 = vmatpush1.msra.mxu0 0.0
    %343 = vmatprep.subr.mxu0 0.0
    %344 = vmatpush1.msra.mxu0 0.0
    %345 = vmatprep.subr.mxu0 0.0
    %346 = vmatpush1.msra.mxu0 0.0
    %347 = vmatprep.subr.mxu0 0.0
    %348 = vmatpush1.msra.mxu0 0.0
    %349 = vmatprep.mubr.f32.mxu0 0.0
    %350 = vmatmul.mubr.f32.gmra.mrb[0].mxu0 %v274
    %v351 = vpop.f32.mrb[0].mxu0
    %v352 = vadd.f32 0.0, %v351
    %v353 = vpop.f32.mrb[0].mxu0
    %354 = vmatprep.mubr.f32.mxu0 0.0
    %355 = vmatmul.mubr.f32.gmra.mrb[0].mxu0 %v277
    %v356 = vpop.f32.mrb[0].mxu0
    %v357 = vadd.f32 0.0, %v356
    %v358 = vpop.f32.mrb[0].mxu0
    %359 = vmatprep.mubr.f32.mxu0 0.0
    %360 = vmatmul.mubr.f32.gmra.mrb[0].mxu0 %v280
    %v361 = vpop.f32.mrb[0].mxu0
    %v362 = vadd.f32 0.0, %v361
    %v363 = vpop.f32.mrb[0].mxu0
    %364 = vmatprep.mubr.f32.mxu0 0.0
    %365 = vmatmul.mubr.f32.gmra.mrb[0].mxu0 %v283
    %v366 = vpop.f32.mrb[0].mxu0
    %v367 = vadd.f32 0.0, %v366
    %v368 = vpop.f32.mrb[0].mxu0
    %369 = vdwg.mxu0
    %v370 = vadd.f32 %v82, %v86
    %v371 = vadd.f32 %v83, %v87
    %v372 = vadd.f32 %v84, %v88
    %v373 = vadd.f32 %v85, %v89
    %v374 = vmul.f32 %v170, 0.5
    %v375 = vmul.f32 %v175, 0.5
    %v376 = vmul.f32 %v180, 0.5
    %v377 = vmul.f32 %v185, 0.5
    %v378 = vadd.f32 %v370, %v374
    %v379 = vadd.f32 %v371, %v375
    %v380 = vadd.f32 %v372, %v376
    %v381 = vadd.f32 %v373, %v377
    %v382 = vmul.f32 %v255, 0.16666667
    %v383 = vmul.f32 %v260, 0.16666667
    %v384 = vmul.f32 %v265, 0.16666667
    %v385 = vmul.f32 %v270, 0.16666667
    %v386 = vadd.f32 %v378, %v382
    %v387 = vadd.f32 %v379, %v383
    %v388 = vadd.f32 %v380, %v384
    %v389 = vadd.f32 %v381, %v385
    %v390 = vmul.f32 %v82, 0.041666668
    %v391 = vmul.f32 %v83, 0.041666668
    %v392 = vmul.f32 %v84, 0.041666668
    %v393 = vmul.f32 %v85, 0.041666668
    %v394 = vmul.f32 %v86, 0.008333334
    %v395 = vmul.f32 %v87, 0.008333334
    %v396 = vmul.f32 %v88, 0.008333334
    %v397 = vmul.f32 %v89, 0.008333334
    %v398 = vadd.f32 %v390, %v394
    %v399 = vadd.f32 %v391, %v395
    %v400 = vadd.f32 %v392, %v396
    %v401 = vadd.f32 %v393, %v397
    %v402 = vmul.f32 %v170, 0.0013888889
    %v403 = vmul.f32 %v175, 0.0013888889
    %v404 = vmul.f32 %v180, 0.0013888889
    %v405 = vmul.f32 %v185, 0.0013888889
    %v406 = vadd.f32 %v398, %v402
    %v407 = vadd.f32 %v399, %v403
    %v408 = vadd.f32 %v400, %v404
    %v409 = vadd.f32 %v401, %v405
    %v410 = vmul.f32 %v255, 0.0001984127
    %v411 = vmul.f32 %v260, 0.0001984127
    %v412 = vmul.f32 %v265, 0.0001984127
    %v413 = vmul.f32 %v270, 0.0001984127
    %v414 = vadd.f32 %v406, %v410
    %v415 = vadd.f32 %v407, %v411
    %v416 = vadd.f32 %v408, %v412
    %v417 = vadd.f32 %v409, %v413
    %v418 = vmul.f32 %v352, 2.4801588e-05
    %v419 = vmul.f32 %v357, 2.4801588e-05
    %v420 = vmul.f32 %v362, 2.4801588e-05
    %v421 = vmul.f32 %v367, 2.4801588e-05
    %v422 = vadd.f32 %v414, %v418
    %v423 = vadd.f32 %v415, %v419
    %v424 = vadd.f32 %v416, %v420
    %v425 = vadd.f32 %v417, %v421
    %v427 = vsel %vm90, %v352, 0
    %v430 = vsel %vm90, %v357, 0
    %v433 = vsel %vm90, %v362, 0
    %v436 = vsel %vm90, %v367, 0
    %438 = vmatprep.subr.mxu0 0.0
    %439 = vmatpush1.msra.mxu0 %v422
    %440 = vmatprep.subr.mxu0 0.0
    %441 = vmatpush1.msra.mxu0 %v423
    %442 = vmatprep.subr.mxu0 0.0
    %443 = vmatpush1.msra.mxu0 %v424
    %444 = vmatprep.subr.mxu0 0.0
    %445 = vmatpush1.msra.mxu0 %v425
    %446 = vmatprep.subr.mxu0 0.0
    %447 = vmatpush1.msra.mxu0 0.0
    %448 = vmatprep.subr.mxu0 0.0
    %449 = vmatpush1.msra.mxu0 0.0
    %450 = vmatprep.subr.mxu0 0.0
    %451 = vmatpush1.msra.mxu0 0.0
    %452 = vmatprep.subr.mxu0 0.0
    %453 = vmatpush1.msra.mxu0 0.0
    %454 = vmatprep.subr.mxu0 0.0
    %455 = vmatpush1.msra.mxu0 0.0
    %456 = vmatprep.subr.mxu0 0.0
    %457 = vmatpush1.msra.mxu0 0.0
    %458 = vmatprep.subr.mxu0 0.0
    %459 = vmatpush1.msra.mxu0 0.0
    %460 = vmatprep.subr.mxu0 0.0
    %461 = vmatpush1.msra.mxu0 0.0
    %462 = vmatprep.subr.mxu0 0.0
    %463 = vmatpush1.msra.mxu0 0.0
    %464 = vmatprep.subr.mxu0 0.0
    %465 = vmatpush1.msra.mxu0 0.0
    %466 = vmatprep.subr.mxu0 0.0
    %467 = vmatpush1.msra.mxu0 0.0
    %468 = vmatprep.subr.mxu0 0.0
    %469 = vmatpush1.msra.mxu0 0.0
    %470 = vmatprep.subr.mxu0 0.0
    %471 = vmatpush1.msra.mxu0 0.0
    %472 = vmatprep.subr.mxu0 0.0
    %473 = vmatpush1.msra.mxu0 0.0
    %474 = vmatprep.subr.mxu0 0.0
    %475 = vmatpush1.msra.mxu0 0.0
    %476 = vmatprep.subr.mxu0 0.0
    %477 = vmatpush1.msra.mxu0 0.0
    %478 = vmatprep.subr.mxu0 0.0
    %479 = vmatpush1.msra.mxu0 0.0
    %480 = vmatprep.subr.mxu0 0.0
    %481 = vmatpush1.msra.mxu0 0.0
    %482 = vmatprep.subr.mxu0 0.0
    %483 = vmatpush1.msra.mxu0 0.0
    %484 = vmatprep.subr.mxu0 0.0
    %485 = vmatpush1.msra.mxu0 0.0
    %486 = vmatprep.subr.mxu0 0.0
    %487 = vmatpush1.msra.mxu0 0.0
    %488 = vmatprep.subr.mxu0 0.0
    %489 = vmatpush1.msra.mxu0 0.0
    %490 = vmatprep.subr.mxu0 0.0
    %491 = vmatpush1.msra.mxu0 0.0
    %492 = vmatprep.subr.mxu0 0.0
    %493 = vmatpush1.msra.mxu0 0.0
    %494 = vmatprep.subr.mxu0 0.0
    %495 = vmatpush1.msra.mxu0 0.0
    %496 = vmatprep.subr.mxu0 0.0
    %497 = vmatpush1.msra.mxu0 0.0
    %498 = vmatprep.subr.mxu0 0.0
    %499 = vmatpush1.msra.mxu0 0.0
    %500 = vmatprep.subr.mxu0 0.0
    %501 = vmatpush1.msra.mxu0 0.0
    %502 = vmatprep.mubr.f32.mxu0 0.0
    %503 = vmatmul.mubr.f32.gmra.mrb[0].mxu0 %v427
    %v504 = vpop.f32.mrb[0].mxu0
    %v505 = vadd.f32 0.0, %v504
    %v506 = vpop.f32.mrb[0].mxu0
    %507 = vmatprep.mubr.f32.mxu0 0.0
    %508 = vmatmul.mubr.f32.gmra.mrb[0].mxu0 %v430
    %v509 = vpop.f32.mrb[0].mxu0
    %v510 = vadd.f32 0.0, %v509
    %v511 = vpop.f32.mrb[0].mxu0
    %512 = vmatprep.mubr.f32.mxu0 0.0
    %513 = vmatmul.mubr.f32.gmra.mrb[0].mxu0 %v433
    %v514 = vpop.f32.mrb[0].mxu0
    %v515 = vadd.f32 0.0, %v514
    %v516 = vpop.f32.mrb[0].mxu0
    %517 = vmatprep.mubr.f32.mxu0 0.0
    %518 = vmatmul.mubr.f32.gmra.mrb[0].mxu0 %v436
    %v519 = vpop.f32.mrb[0].mxu0
    %v520 = vadd.f32 0.0, %v519
    %v521 = vpop.f32.mrb[0].mxu0
    %522 = vdwg.mxu0
    %v523 = vadd.f32 %v386, %v505
    %v524 = vadd.f32 %v387, %v510
    %v525 = vadd.f32 %v388, %v515
    %v526 = vadd.f32 %v389, %v520
    %v528 = vsel %vm90, %v523, 0
    %v531 = vsel %vm90, %v524, 0
    %v534 = vsel %vm90, %v525, 0
    %v537 = vsel %vm90, %v526, 0
    %539 = vmatprep.subr.mxu0 0.0
    %540 = vmatpush1.msra.mxu0 %v523
    %541 = vmatprep.subr.mxu0 0.0
    %542 = vmatpush1.msra.mxu0 %v524
    %543 = vmatprep.subr.mxu0 0.0
    %544 = vmatpush1.msra.mxu0 %v525
    %545 = vmatprep.subr.mxu0 0.0
    %546 = vmatpush1.msra.mxu0 %v526
    %547 = vmatprep.subr.mxu0 0.0
    %548 = vmatpush1.msra.mxu0 0.0
    %549 = vmatprep.subr.mxu0 0.0
    %550 = vmatpush1.msra.mxu0 0.0
    %551 = vmatprep.subr.mxu0 0.0
    %552 = vmatpush1.msra.mxu0 0.0
    %553 = vmatprep.subr.mxu0 0.0
    %554 = vmatpush1.msra.mxu0 0.0
    %555 = vmatprep.subr.mxu0 0.0
    %556 = vmatpush1.msra.mxu0 0.0
    %557 = vmatprep.subr.mxu0 0.0
    %558 = vmatpush1.msra.mxu0 0.0
    %559 = vmatprep.subr.mxu0 0.0
    %560 = vmatpush1.msra.mxu0 0.0
    %561 = vmatprep.subr.mxu0 0.0
    %562 = vmatpush1.msra.mxu0 0.0
    %563 = vmatprep.subr.mxu0 0.0
    %564 = vmatpush1.msra.mxu0 0.0
    %565 = vmatprep.subr.mxu0 0.0
    %566 = vmatpush1.msra.mxu0 0.0
    %567 = vmatprep.subr.mxu0 0.0
    %568 = vmatpush1.msra.mxu0 0.0
    %569 = vmatprep.subr.mxu0 0.0
    %570 = vmatpush1.msra.mxu0 0.0
    %571 = vmatprep.subr.mxu0 0.0
    %572 = vmatpush1.msra.mxu0 0.0
    %573 = vmatprep.subr.mxu0 0.0
    %574 = vmatpush1.msra.mxu0 0.0
    %575 = vmatprep.subr.mxu0 0.0
    %576 = vmatpush1.msra.mxu0 0.0
    %577 = vmatprep.subr.mxu0 0.0
    %578 = vmatpush1.msra.mxu0 0.0
    %579 = vmatprep.subr.mxu0 0.0
    %580 = vmatpush1.msra.mxu0 0.0
    %581 = vmatprep.subr.mxu0 0.0
    %582 = vmatpush1.msra.mxu0 0.0
    %583 = vmatprep.subr.mxu0 0.0
    %584 = vmatpush1.msra.mxu0 0.0
    %585 = vmatprep.subr.mxu0 0.0
    %586 = vmatpush1.msra.mxu0 0.0
    %587 = vmatprep.subr.mxu0 0.0
    %588 = vmatpush1.msra.mxu0 0.0
    %589 = vmatprep.subr.mxu0 0.0
    %590 = vmatpush1.msra.mxu0 0.0
    %591 = vmatprep.subr.mxu0 0.0
    %592 = vmatpush1.msra.mxu0 0.0
    %593 = vmatprep.subr.mxu0 0.0
    %594 = vmatpush1.msra.mxu0 0.0
    %595 = vmatprep.subr.mxu0 0.0
    %596 = vmatpush1.msra.mxu0 0.0
    %597 = vmatprep.subr.mxu0 0.0
    %598 = vmatpush1.msra.mxu0 0.0
    %599 = vmatprep.subr.mxu0 0.0
    %600 = vmatpush1.msra.mxu0 0.0
    %601 = vmatprep.subr.mxu0 0.0
    %602 = vmatpush1.msra.mxu0 0.0
    %603 = vmatprep.mubr.f32.mxu0 0.0
    %604 = vmatmul.mubr.f32.gmra.mrb[0].mxu0 %v528
    %v605 = vpop.f32.mrb[0].mxu0
    %v606 = vadd.f32 0.0, %v605
    %v607 = vpop.f32.mrb[0].mxu0
    %608 = vmatprep.mubr.f32.mxu0 0.0
    %609 = vmatmul.mubr.f32.gmra.mrb[0].mxu0 %v531
    %v610 = vpop.f32.mrb[0].mxu0
    %v611 = vadd.f32 0.0, %v610
    %v612 = vpop.f32.mrb[0].mxu0
    %613 = vmatprep.mubr.f32.mxu0 0.0
    %614 = vmatmul.mubr.f32.gmra.mrb[0].mxu0 %v534
    %v615 = vpop.f32.mrb[0].mxu0
    %v616 = vadd.f32 0.0, %v615
    %v617 = vpop.f32.mrb[0].mxu0
    %618 = vmatprep.mubr.f32.mxu0 0.0
    %619 = vmatmul.mubr.f32.gmra.mrb[0].mxu0 %v537
    %v620 = vpop.f32.mrb[0].mxu0
    %v621 = vadd.f32 0.0, %v620
    %v622 = vpop.f32.mrb[0].mxu0
    %623 = vdwg.mxu0
    %v625 = vsel %vm90, %v606, 0
    %v628 = vsel %vm90, %v611, 0
    %v631 = vsel %vm90, %v616, 0
    %v634 = vsel %vm90, %v621, 0
    %636 = vmatprep.subr.mxu0 0.0
    %637 = vmatpush1.msra.mxu0 %v606
    %638 = vmatprep.subr.mxu0 0.0
    %639 = vmatpush1.msra.mxu0 %v611
    %640 = vmatprep.subr.mxu0 0.0
    %641 = vmatpush1.msra.mxu0 %v616
    %642 = vmatprep.subr.mxu0 0.0
    %643 = vmatpush1.msra.mxu0 %v621
    %644 = vmatprep.subr.mxu0 0.0
    %645 = vmatpush1.msra.mxu0 0.0
    %646 = vmatprep.subr.mxu0 0.0
    %647 = vmatpush1.msra.mxu0 0.0
    %648 = vmatprep.subr.mxu0 0.0
    %649 = vmatpush1.msra.mxu0 0.0
    %650 = vmatprep.subr.mxu0 0.0
    %651 = vmatpush1.msra.mxu0 0.0
    %652 = vmatprep.subr.mxu0 0.0
    %653 = vmatpush1.msra.mxu0 0.0
    %654 = vmatprep.subr.mxu0 0.0
    %655 = vmatpush1.msra.mxu0 0.0
    %656 = vmatprep.subr.mxu0 0.0
    %657 = vmatpush1.msra.mxu0 0.0
    %658 = vmatprep.subr.mxu0 0.0
    %659 = vmatpush1.msra.mxu0 0.0
    %660 = vmatprep.subr.mxu0 0.0
    %661 = vmatpush1.msra.mxu0 0.0
    %662 = vmatprep.subr.mxu0 0.0
    %663 = vmatpush1.msra.mxu0 0.0
    %664 = vmatprep.subr.mxu0 0.0
    %665 = vmatpush1.msra.mxu0 0.0
    %666 = vmatprep.subr.mxu0 0.0
    %667 = vmatpush1.msra.mxu0 0.0
    %668 = vmatprep.subr.mxu0 0.0
    %669 = vmatpush1.msra.mxu0 0.0
    %670 = vmatprep.subr.mxu0 0.0
    %671 = vmatpush1.msra.mxu0 0.0
    %672 = vmatprep.subr.mxu0 0.0
    %673 = vmatpush1.msra.mxu0 0.0
    %674 = vmatprep.subr.mxu0 0.0
    %675 = vmatpush1.msra.mxu0 0.0
    %676 = vmatprep.subr.mxu0 0.0
    %677 = vmatpush1.msra.mxu0 0.0
    %678 = vmatprep.subr.mxu0 0.0
    %679 = vmatpush1.msra.mxu0 0.0
    %680 = vmatprep.subr.mxu0 0.0
    %681 = vmatpush1.msra.mxu0 0.0
    %682 = vmatprep.subr.mxu0 0.0
    %683 = vmatpush1.msra.mxu0 0.0
    %684 = vmatprep.subr.mxu0 0.0
    %685 = vmatpush1.msra.mxu0 0.0
    %686 = vmatprep.subr.mxu0 0.0
    %687 = vmatpush1.msra.mxu0 0.0
    %688 = vmatprep.subr.mxu0 0.0
    %689 = vmatpush1.msra.mxu0 0.0
    %690 = vmatprep.subr.mxu0 0.0
    %691 = vmatpush1.msra.mxu0 0.0
    %692 = vmatprep.subr.mxu0 0.0
    %693 = vmatpush1.msra.mxu0 0.0
    %694 = vmatprep.subr.mxu0 0.0
    %695 = vmatpush1.msra.mxu0 0.0
    %696 = vmatprep.subr.mxu0 0.0
    %697 = vmatpush1.msra.mxu0 0.0
    %698 = vmatprep.subr.mxu0 0.0
    %699 = vmatpush1.msra.mxu0 0.0
    %700 = vmatprep.mubr.f32.mxu0 0.0
    %701 = vmatmul.mubr.f32.gmra.mrb[0].mxu0 %v625
    %v702 = vpop.f32.mrb[0].mxu0
    %v703 = vadd.f32 0.0, %v702
    %v704 = vpop.f32.mrb[0].mxu0
    %705 = vmatprep.mubr.f32.mxu0 0.0
    %706 = vmatmul.mubr.f32.gmra.mrb[0].mxu0 %v628
    %v707 = vpop.f32.mrb[0].mxu0
    %v708 = vadd.f32 0.0, %v707
    %v709 = vpop.f32.mrb[0].mxu0
    %710 = vmatprep.mubr.f32.mxu0 0.0
    %711 = vmatmul.mubr.f32.gmra.mrb[0].mxu0 %v631
    %v712 = vpop.f32.mrb[0].mxu0
    %v713 = vadd.f32 0.0, %v712
    %v714 = vpop.f32.mrb[0].mxu0
    %715 = vmatprep.mubr.f32.mxu0 0.0
    %716 = vmatmul.mubr.f32.gmra.mrb[0].mxu0 %v634
    %v717 = vpop.f32.mrb[0].mxu0
    %v718 = vadd.f32 0.0, %v717
    %v719 = vpop.f32.mrb[0].mxu0
    %720 = vdwg.mxu0
    %v722 = vsel %vm90, %v703, 0
    %v725 = vsel %vm90, %v708, 0
    %v728 = vsel %vm90, %v713, 0
    %v731 = vsel %vm90, %v718, 0
    %733 = vmatprep.subr.mxu0 0.0
    %734 = vmatpush1.msra.mxu0 %v703
    %735 = vmatprep.subr.mxu0 0.0
    %736 = vmatpush1.msra.mxu0 %v708
    %737 = vmatprep.subr.mxu0 0.0
    %738 = vmatpush1.msra.mxu0 %v713
    %739 = vmatprep.subr.mxu0 0.0
    %740 = vmatpush1.msra.mxu0 %v718
    %741 = vmatprep.subr.mxu0 0.0
    %742 = vmatpush1.msra.mxu0 0.0
    %743 = vmatprep.subr.mxu0 0.0
    %744 = vmatpush1.msra.mxu0 0.0
    %745 = vmatprep.subr.mxu0 0.0
    %746 = vmatpush1.msra.mxu0 0.0
    %747 = vmatprep.subr.mxu0 0.0
    %748 = vmatpush1.msra.mxu0 0.0
    %749 = vmatprep.subr.mxu0 0.0
    %750 = vmatpush1.msra.mxu0 0.0
    %751 = vmatprep.subr.mxu0 0.0
    %752 = vmatpush1.msra.mxu0 0.0
    %753 = vmatprep.subr.mxu0 0.0
    %754 = vmatpush1.msra.mxu0 0.0
    %755 = vmatprep.subr.mxu0 0.0
    %756 = vmatpush1.msra.mxu0 0.0
    %757 = vmatprep.subr.mxu0 0.0
    %758 = vmatpush1.msra.mxu0 0.0
    %759 = vmatprep.subr.mxu0 0.0
    %760 = vmatpush1.msra.mxu0 0.0
    %761 = vmatprep.subr.mxu0 0.0
    %762 = vmatpush1.msra.mxu0 0.0
    %763 = vmatprep.subr.mxu0 0.0
    %764 = vmatpush1.msra.mxu0 0.0
    %765 = vmatprep.subr.mxu0 0.0
    %766 = vmatpush1.msra.mxu0 0.0
    %767 = vmatprep.subr.mxu0 0.0
    %768 = vmatpush1.msra.mxu0 0.0
    %769 = vmatprep.subr.mxu0 0.0
    %770 = vmatpush1.msra.mxu0 0.0
    %771 = vmatprep.subr.mxu0 0.0
    %772 = vmatpush1.msra.mxu0 0.0
    %773 = vmatprep.subr.mxu0 0.0
    %774 = vmatpush1.msra.mxu0 0.0
    %775 = vmatprep.subr.mxu0 0.0
    %776 = vmatpush1.msra.mxu0 0.0
    %777 = vmatprep.subr.mxu0 0.0
    %778 = vmatpush1.msra.mxu0 0.0
    %779 = vmatprep.subr.mxu0 0.0
    %780 = vmatpush1.msra.mxu0 0.0
    %781 = vmatprep.subr.mxu0 0.0
    %782 = vmatpush1.msra.mxu0 0.0
    %783 = vmatprep.subr.mxu0 0.0
    %784 = vmatpush1.msra.mxu0 0.0
    %785 = vmatprep.subr.mxu0 0.0
    %786 = vmatpush1.msra.mxu0 0.0
    %787 = vmatprep.subr.mxu0 0.0
    %788 = vmatpush1.msra.mxu0 0.0
    %789 = vmatprep.subr.mxu0 0.0
    %790 = vmatpush1.msra.mxu0 0.0
    %791 = vmatprep.subr.mxu0 0.0
    %792 = vmatpush1.msra.mxu0 0.0
    %793 = vmatprep.subr.mxu0 0.0
    %794 = vmatpush1.msra.mxu0 0.0
    %795 = vmatprep.subr.mxu0 0.0
    %796 = vmatpush1.msra.mxu0 0.0
    %797 = vmatprep.mubr.f32.mxu0 0.0
    %798 = vmatmul.mubr.f32.gmra.mrb[0].mxu0 %v722
    %v799 = vpop.f32.mrb[0].mxu0
    %v800 = vadd.f32 0.0, %v799
    %v801 = vpop.f32.mrb[0].mxu0
    %802 = vmatprep.mubr.f32.mxu0 0.0
    %803 = vmatmul.mubr.f32.gmra.mrb[0].mxu0 %v725
    %v804 = vpop.f32.mrb[0].mxu0
    %v805 = vadd.f32 0.0, %v804
    %v806 = vpop.f32.mrb[0].mxu0
    %807 = vmatprep.mubr.f32.mxu0 0.0
    %808 = vmatmul.mubr.f32.gmra.mrb[0].mxu0 %v728
    %v809 = vpop.f32.mrb[0].mxu0
    %v810 = vadd.f32 0.0, %v809
    %v811 = vpop.f32.mrb[0].mxu0
    %812 = vmatprep.mubr.f32.mxu0 0.0
    %813 = vmatmul.mubr.f32.gmra.mrb[0].mxu0 %v731
    %v814 = vpop.f32.mrb[0].mxu0
    %v815 = vadd.f32 0.0, %v814
    %v816 = vpop.f32.mrb[0].mxu0
    %817 = vdwg.mxu0
    %v819 = vsel %vm90, %v800, 0
    %v822 = vsel %vm90, %v805, 0
    %v825 = vsel %vm90, %v810, 0
    %v828 = vsel %vm90, %v815, 0
    %830 = vmatprep.subr.mxu0 0.0
    %831 = vmatpush1.msra.mxu0 %v800
    %832 = vmatprep.subr.mxu0 0.0
    %833 = vmatpush1.msra.mxu0 %v805
    %834 = vmatprep.subr.mxu0 0.0
    %835 = vmatpush1.msra.mxu0 %v810
    %836 = vmatprep.subr.mxu0 0.0
    %837 = vmatpush1.msra.mxu0 %v815
    %838 = vmatprep.subr.mxu0 0.0
    %839 = vmatpush1.msra.mxu0 0.0
    %840 = vmatprep.subr.mxu0 0.0
    %841 = vmatpush1.msra.mxu0 0.0
    %842 = vmatprep.subr.mxu0 0.0
    %843 = vmatpush1.msra.mxu0 0.0
    %844 = vmatprep.subr.mxu0 0.0
    %845 = vmatpush1.msra.mxu0 0.0
    %846 = vmatprep.subr.mxu0 0.0
    %847 = vmatpush1.msra.mxu0 0.0
    %848 = vmatprep.subr.mxu0 0.0
    %849 = vmatpush1.msra.mxu0 0.0
    %850 = vmatprep.subr.mxu0 0.0
    %851 = vmatpush1.msra.mxu0 0.0
    %852 = vmatprep.subr.mxu0 0.0
    %853 = vmatpush1.msra.mxu0 0.0
    %854 = vmatprep.subr.mxu0 0.0
    %855 = vmatpush1.msra.mxu0 0.0
    %856 = vmatprep.subr.mxu0 0.0
    %857 = vmatpush1.msra.mxu0 0.0
    %858 = vmatprep.subr.mxu0 0.0
    %859 = vmatpush1.msra.mxu0 0.0
    %860 = vmatprep.subr.mxu0 0.0
    %861 = vmatpush1.msra.mxu0 0.0
    %862 = vmatprep.subr.mxu0 0.0
    %863 = vmatpush1.msra.mxu0 0.0
    %864 = vmatprep.subr.mxu0 0.0
    %865 = vmatpush1.msra.mxu0 0.0
    %866 = vmatprep.subr.mxu0 0.0
    %867 = vmatpush1.msra.mxu0 0.0
    %868 = vmatprep.subr.mxu0 0.0
    %869 = vmatpush1.msra.mxu0 0.0
    %870 = vmatprep.subr.mxu0 0.0
    %871 = vmatpush1.msra.mxu0 0.0
    %872 = vmatprep.subr.mxu0 0.0
    %873 = vmatpush1.msra.mxu0 0.0
    %874 = vmatprep.subr.mxu0 0.0
    %875 = vmatpush1.msra.mxu0 0.0
    %876 = vmatprep.subr.mxu0 0.0
    %877 = vmatpush1.msra.mxu0 0.0
    %878 = vmatprep.subr.mxu0 0.0
    %879 = vmatpush1.msra.mxu0 0.0
    %880 = vmatprep.subr.mxu0 0.0
    %881 = vmatpush1.msra.mxu0 0.0
    %882 = vmatprep.subr.mxu0 0.0
    %883 = vmatpush1.msra.mxu0 0.0
    %884 = vmatprep.subr.mxu0 0.0
    %885 = vmatpush1.msra.mxu0 0.0
    %886 = vmatprep.subr.mxu0 0.0
    %887 = vmatpush1.msra.mxu0 0.0
    %888 = vmatprep.subr.mxu0 0.0
    %889 = vmatpush1.msra.mxu0 0.0
    %890 = vmatprep.subr.mxu0 0.0
    %891 = vmatpush1.msra.mxu0 0.0
    %892 = vmatprep.subr.mxu0 0.0
    %893 = vmatpush1.msra.mxu0 0.0
    %894 = vmatprep.mubr.f32.mxu0 0.0
    %895 = vmatmul.mubr.f32.gmra.mrb[0].mxu0 %v819
    %v896 = vpop.f32.mrb[0].mxu0
    %v897 = vadd.f32 0.0, %v896
    %v898 = vpop.f32.mrb[0].mxu0
    %899 = vmatprep.mubr.f32.mxu0 0.0
    %900 = vmatmul.mubr.f32.gmra.mrb[0].mxu0 %v822
    %v901 = vpop.f32.mrb[0].mxu0
    %v902 = vadd.f32 0.0, %v901
    %v903 = vpop.f32.mrb[0].mxu0
    %904 = vmatprep.mubr.f32.mxu0 0.0
    %905 = vmatmul.mubr.f32.gmra.mrb[0].mxu0 %v825
    %v906 = vpop.f32.mrb[0].mxu0
    %v907 = vadd.f32 0.0, %v906
    %v908 = vpop.f32.mrb[0].mxu0
    %909 = vmatprep.mubr.f32.mxu0 0.0
    %910 = vmatmul.mubr.f32.gmra.mrb[0].mxu0 %v828
    %v911 = vpop.f32.mrb[0].mxu0
    %v912 = vadd.f32 0.0, %v911
    %v913 = vpop.f32.mrb[0].mxu0
    %914 = vdwg.mxu0
    %v916 = vsel %vm90, %v897, 0
    %v919 = vsel %vm90, %v902, 0
    %v922 = vsel %vm90, %v907, 0
    %v925 = vsel %vm90, %v912, 0
    %927 = vmatprep.subr.mxu0 0.0
    %928 = vmatpush1.msra.mxu0 %v897
    %929 = vmatprep.subr.mxu0 0.0
    %930 = vmatpush1.msra.mxu0 %v902
    %931 = vmatprep.subr.mxu0 0.0
    %932 = vmatpush1.msra.mxu0 %v907
    %933 = vmatprep.subr.mxu0 0.0
    %934 = vmatpush1.msra.mxu0 %v912
    %935 = vmatprep.subr.mxu0 0.0
    %936 = vmatpush1.msra.mxu0 0.0
    %937 = vmatprep.subr.mxu0 0.0
    %938 = vmatpush1.msra.mxu0 0.0
    %939 = vmatprep.subr.mxu0 0.0
    %940 = vmatpush1.msra.mxu0 0.0
    %941 = vmatprep.subr.mxu0 0.0
    %942 = vmatpush1.msra.mxu0 0.0
    %943 = vmatprep.subr.mxu0 0.0
    %944 = vmatpush1.msra.mxu0 0.0
    %945 = vmatprep.subr.mxu0 0.0
    %946 = vmatpush1.msra.mxu0 0.0
    %947 = vmatprep.subr.mxu0 0.0
    %948 = vmatpush1.msra.mxu0 0.0
    %949 = vmatprep.subr.mxu0 0.0
    %950 = vmatpush1.msra.mxu0 0.0
    %951 = vmatprep.subr.mxu0 0.0
    %952 = vmatpush1.msra.mxu0 0.0
    %953 = vmatprep.subr.mxu0 0.0
    %954 = vmatpush1.msra.mxu0 0.0
    %955 = vmatprep.subr.mxu0 0.0
    %956 = vmatpush1.msra.mxu0 0.0
    %957 = vmatprep.subr.mxu0 0.0
    %958 = vmatpush1.msra.mxu0 0.0
    %959 = vmatprep.subr.mxu0 0.0
    %960 = vmatpush1.msra.mxu0 0.0
    %961 = vmatprep.subr.mxu0 0.0
    %962 = vmatpush1.msra.mxu0 0.0
    %963 = vmatprep.subr.mxu0 0.0
    %964 = vmatpush1.msra.mxu0 0.0
    %965 = vmatprep.subr.mxu0 0.0
    %966 = vmatpush1.msra.mxu0 0.0
    %967 = vmatprep.subr.mxu0 0.0
    %968 = vmatpush1.msra.mxu0 0.0
    %969 = vmatprep.subr.mxu0 0.0
    %970 = vmatpush1.msra.mxu0 0.0
    %971 = vmatprep.subr.mxu0 0.0
    %972 = vmatpush1.msra.mxu0 0.0
    %973 = vmatprep.subr.mxu0 0.0
    %974 = vmatpush1.msra.mxu0 0.0
    %975 = vmatprep.subr.mxu0 0.0
    %976 = vmatpush1.msra.mxu0 0.0
    %977 = vmatprep.subr.mxu0 0.0
    %978 = vmatpush1.msra.mxu0 0.0
    %979 = vmatprep.subr.mxu0 0.0
    %980 = vmatpush1.msra.mxu0 0.0
    %981 = vmatprep.subr.mxu0 0.0
    %982 = vmatpush1.msra.mxu0 0.0
    %983 = vmatprep.subr.mxu0 0.0
    %984 = vmatpush1.msra.mxu0 0.0
    %985 = vmatprep.subr.mxu0 0.0
    %986 = vmatpush1.msra.mxu0 0.0
    %987 = vmatprep.subr.mxu0 0.0
    %988 = vmatpush1.msra.mxu0 0.0
    %989 = vmatprep.subr.mxu0 0.0
    %990 = vmatpush1.msra.mxu0 0.0
    %991 = vmatprep.mubr.f32.mxu0 0.0
    %992 = vmatmul.mubr.f32.gmra.mrb[0].mxu0 %v916
    %v993 = vpop.f32.mrb[0].mxu0
    %v994 = vadd.f32 0.0, %v993
    %v995 = vpop.f32.mrb[0].mxu0
    %996 = vmatprep.mubr.f32.mxu0 0.0
    %997 = vmatmul.mubr.f32.gmra.mrb[0].mxu0 %v919
    %v998 = vpop.f32.mrb[0].mxu0
    %v999 = vadd.f32 0.0, %v998
    %v1000 = vpop.f32.mrb[0].mxu0
    %1001 = vmatprep.mubr.f32.mxu0 0.0
    %1002 = vmatmul.mubr.f32.gmra.mrb[0].mxu0 %v922
    %v1003 = vpop.f32.mrb[0].mxu0
    %v1004 = vadd.f32 0.0, %v1003
    %v1005 = vpop.f32.mrb[0].mxu0
    %1006 = vmatprep.mubr.f32.mxu0 0.0
    %1007 = vmatmul.mubr.f32.gmra.mrb[0].mxu0 %v925
    %v1008 = vpop.f32.mrb[0].mxu0
    %v1009 = vadd.f32 0.0, %v1008
    %v1010 = vpop.f32.mrb[0].mxu0
    %1011 = vdwg.mxu0
    %1012 = vst.msk [vmem:[#allocation5] sm:$0xff] %vm90, %v994
    %1013 = vst.msk [vmem:[#allocation5 + $0x8] sm:$0xff] %vm90, %v999
    %1014 = vst.msk [vmem:[#allocation5 + $0x10] sm:$0xff] %vm90, %v1004
    %1015 = vst.msk [vmem:[#allocation5 + $0x18] sm:$0xff] %vm90, %v1009
    // Predicated region
    $region10: #{tpu_custom_call.1} parent=1 // pred_check
      _
    $region11: #{tpu_custom_call.1} parent=1 // pred_check_branch
      %1017 = sbr.rel (0) target = $region13
    $region12: #{tpu_custom_call.1} parent=1 // pred_region
      %s1019 = ssub.s32 512, 512
      %1020 = vsyncadd [#allocation4], %s1019
      %s1021 = sshll.u32 [#allocation5], 4
      %s1022 = int_to_ptr.vmem [resolvable:$true] %s1021
      %1027 = dma.vmem_to_hbm [thread:$0]  %s1022, 512, %s1, [#allocation4], 128, 128, 8
    $region13: #{tpu_custom_call.1} parent=1 // pred_fallthru
      _
    // Predicated region
    $region14: #{tpu_custom_call.1} parent=1 // pred_check
      _
    $region15: #{tpu_custom_call.1} parent=1 // pred_check_branch
      %1029 = sbr.rel (0) target = $region17
    $region16: #{tpu_custom_call.1} parent=1 // pred_region
      %1030 = dma.done [#allocation4], 512
    $region17: #{tpu_custom_call.1} parent=1 // pred_fallthru
      _
    %1031 = vsyncpa [#allocation3], 1
    %1032 = vsyncpa [#allocation4], 1

</llo_original>
